<compile_context>
chip_gen: v5e
topology: v5e:2x2
jax: 0.10.0
libtpu: 0.0.40
codegen_flags: <defaults>
</compile_context>

<pallas_src>
import jax
import jax.numpy as jnp
from jax.experimental import pallas as pl
from jax.experimental.pallas import tpu as pltpu


def _copy_kernel(x_ref, o_ref):
    # Pure identity copy of a lane-dense 2-D tile; no reshape, no VPU work.
    o_ref[...] = x_ref[...]


_LANE = 128                               # TPU lane width
_MAX_COLS = 2048                          # keep lane dim large but bounded
_TARGET_TILE_BYTES = 4 * 1024 * 1024      # ~4 MiB/tile: 4 live buffers = 16 MiB,
                                          # fits v5e/v6e/v7x with the raised
                                          # vmem_limit_bytes below
_VMEM_LIMIT_BYTES = 48 * 1024 * 1024      # safe on all gens (v7x physical = 64 MiB)


def _choose_2d_view(total):
    """Pick a lane-dense (rows, cols) factorization of `total` elements.

    Caller guarantees total % 128 == 0 (non-divisible totals bypass Pallas).
    """
    cols = _LANE
    while total % (cols * 2) == 0 and cols * 2 <= _MAX_COLS:
        cols *= 2
    return total // cols, cols


def _pallas_identity_copy(x2):
    """Materialize a copy of a lane-dense 2-D array with a tiled Pallas kernel."""
    rows, cols = x2.shape
    itemsize = x2.dtype.itemsize

    # dtype-aware sublane multiple: f32 -> 8, bf16/f16 -> 16, int8/fp8 -> 32.
    sublane = max(8, 32 // itemsize)

    bytes_per_row = cols * itemsize
    tile_r = max(1, _TARGET_TILE_BYTES // bytes_per_row)
    if tile_r >= rows:
        tile_r = rows                       # full-extent block: always legal
    else:
        tile_r = max(sublane, (tile_r // sublane) * sublane)

    grid = (pl.cdiv(rows, tile_r),)
    total_bytes = rows * cols * itemsize

    return pl.pallas_call(
        _copy_kernel,
        out_shape=jax.ShapeDtypeStruct((rows, cols), x2.dtype),
        grid=grid,
        in_specs=[pl.BlockSpec((tile_r, cols), lambda i: (i, 0))],
        out_specs=pl.BlockSpec((tile_r, cols), lambda i: (i, 0)),
        compiler_params=pltpu.CompilerParams(
            dimension_semantics=("parallel",),
            vmem_limit_bytes=_VMEM_LIMIT_BYTES,
        ),
        cost_estimate=pl.CostEstimate(
            flops=0, transcendentals=0, bytes_accessed=2 * total_bytes),
    )(x2)


def unsqueeze(x, *, force_pallas_copy=False):
    """Reproduces UnSqueeze.forward: return x if 4-D else x.unsqueeze(1).

    Default path is the zero-cost metadata reshape (no kernel, no HBM
    traffic). Set force_pallas_copy=True to materialize the result through
    the Pallas identity-copy kernel.
    """
    if x.ndim == 4:
        return x

    assert x.ndim == 3, f"expected 3-D (N, H, W) input, got {x.shape}"
    N, H, W = x.shape
    total = N * H * W

    if not force_pallas_copy:
        # unsqueeze is metadata-only: free reshape, zero HBM traffic.
        return x.reshape(N, 1, H, W)

    if total % _LANE != 0:
        # No lane-dense view exists; a (1, total) single block would blow the
        # scoped-VMEM budget for large inputs. Bypass Pallas (review fix).
        return x.reshape(N, 1, H, W)

    rows, cols = _choose_2d_view(total)
    x2 = x.reshape(rows, cols)              # free metadata reshape in XLA
    y2 = _pallas_identity_copy(x2)
    return y2.reshape(N, 1, H, W)           # channel insertion is free


if __name__ == "__main__":
    key = jax.random.PRNGKey(0)

    # 3-D case, default (zero-copy) path: channel dim inserted -> (N, 1, H, W)
    x3 = jax.random.normal(key, (2, 16, 16), dtype=jnp.float32)
    y3 = unsqueeze(x3)
    jax.block_until_ready(y3)
    assert y3.shape == (2, 1, 16, 16), y3.shape
    assert jnp.allclose(y3, x3[:, None, :, :]), "mismatch (zero-copy path)"

    # Same input through the explicit Pallas identity-copy kernel.
    y3k = unsqueeze(x3, force_pallas_copy=True)
    jax.block_until_ready(y3k)
    assert y3k.shape == (2, 1, 16, 16), y3k.shape
    assert jnp.allclose(y3k, x3[:, None, :, :]), "mismatch (pallas copy path)"

    # bf16 input (exercises dtype-aware sublane rounding) through the kernel.
    xb = jax.random.normal(key, (2, 16, 32), dtype=jnp.bfloat16)
    yb = unsqueeze(xb, force_pallas_copy=True)
    jax.block_until_ready(yb)
    assert yb.shape == (2, 1, 16, 32), yb.shape
    assert jnp.array_equal(yb, xb[:, None, :, :]), "mismatch (bf16 path)"

    # 3-D case with an odd element count: kernel is bypassed (review fix).
    x3b = jax.random.normal(key, (3, 5, 7), dtype=jnp.float32)
    y3b = unsqueeze(x3b, force_pallas_copy=True)
    jax.block_until_ready(y3b)
    assert y3b.shape == (3, 1, 5, 7), y3b.shape
    assert jnp.allclose(y3b, x3b[:, None, :, :]), "mismatch (odd-size path)"

    # 4-D case: identity pass-through (matches PyTorch semantics).
    x4 = jax.random.normal(key, (2, 4, 16, 16), dtype=jnp.float32)
    y4 = unsqueeze(x4)
    jax.block_until_ready(y4)
    assert y4.shape == (2, 4, 16, 16)
    assert jnp.allclose(y4, x4)

    print("KERNEL_OK")
</pallas_src>

<mosaic_0001>
module attributes {stable_mosaic.version = 11 : i64} {
  func.func @_copy_kernel(%arg0: i32, %arg1: memref<1x512xf32, #tpu.memory_space<vmem>>, %arg2: memref<1x512xf32, #tpu.memory_space<vmem>>) attributes {dimension_semantics = [#tpu.dimension_semantics<parallel>], iteration_bounds = array<i64: 1>, scalar_prefetch = 0 : i64, scratch_operands = 0 : i64, tpu.core_type = #tpu.core_type<tc>, window_params = [{transform_indices = @transform_0, window_bounds = array<i64: 1, 512>}, {transform_indices = @transform_1, window_bounds = array<i64: 1, 512>}]} {
    %c0 = arith.constant 0 : index
    %c0_0 = arith.constant 0 : index
    %0 = vector.load %arg1[%c0, %c0_0] : memref<1x512xf32, #tpu.memory_space<vmem>>, vector<1x512xf32>
    %c0_1 = arith.constant 0 : index
    %c0_2 = arith.constant 0 : index
    %1 = vector.load %arg2[%c0_1, %c0_2] : memref<1x512xf32, #tpu.memory_space<vmem>>, vector<1x512xf32>
    tpu.vector_store %arg2[%c0_1, %c0_2], %0 {strides = array<i32>} : memref<1x512xf32, #tpu.memory_space<vmem>>, vector<1x512xf32>,
    return
  }
  func.func @transform_0(%arg0: i32) -> (i32, i32) {
    %c0_i32 = arith.constant 0 : i32
    %c0_i32_0 = arith.constant 0 : i32
    return %arg0, %c0_i32 : i32, i32
  }
  func.func @transform_1(%arg0: i32) -> (i32, i32) {
    %c0_i32 = arith.constant 0 : i32
    %c0_i32_0 = arith.constant 0 : i32
    return %arg0, %c0_i32 : i32, i32
  }
}

</mosaic_0001>

<llo_original>
// kernel: tpu_custom_call.1
$region0: #{tpu_custom_call.1}
  #allocation0 [shape = 'u32[]', space=smem, size = 0x4, offset = 0x4, fixed_abs, tag = 'smem constant byte address 0x4 - core index']
  #allocation1 [shape = 'u32[72,128]{1,0:T(1,128)}', space=vmem, size = 0x9000, scoped, tag = 'internal scratch']
  %s0 = inlined_call_operand.hbm [shape: f32[1,512], index: 0, kind: input, shape index: {}]
  %s1 = inlined_call_operand.hbm [shape: f32[1,512], index: 1, kind: output, shape index: {}]
  %s2 = sld [smem:[#allocation0]]
  $region18: #{tpu_custom_call.1} parent=0
    _
  %s4 = ssub.s32 1, %s2
  %s5 = scalar_select 0, %s4, %s2
  $region1: #{tpu_custom_call.1} parent=0
    #allocation2 [shape = 'u8[2048]{0}', space=vmem, size = 0x800, scoped, tag = 'input window, operand 0, single buffered']
    #allocation3 [shape = 's32[1]{0}', space=sflag, size = 0x4, scoped, tag = 'scoped memory for tpu_custom_call.1']
    #allocation4 [shape = 's32[1]{0}', space=sflag, size = 0x4, scoped, tag = 'scoped memory for tpu_custom_call.1']
    #allocation5 [shape = 'u8[2048]{0}', space=vmem, size = 0x800, scoped, tag = 'output window, operand 0, single buffered']
    %6 = vsyncpa [#allocation3], 0
    %7 = vsyncpa [#allocation4], 0
    // Predicated region
    $region2: #{tpu_custom_call.1} parent=1 // pred_check
      _
    $region3: #{tpu_custom_call.1} parent=1 // pred_check_branch
      %9 = sbr.rel (0) target = $region5
    $region4: #{tpu_custom_call.1} parent=1 // pred_region
      %11 = vsyncadd [#allocation3], 0
      %s13 = sshll.u32 %s0, 4
      %s14 = int_to_ptr.hbm [resolvable:$true] %s13
      %s15 = sshll.u32 [#allocation2], 4
      %s16 = int_to_ptr.vmem [resolvable:$true] %s15
      %18 = dma.hbm_to_vmem [thread:$0]  %s14, 64, %s16, [#allocation3]
    $region5: #{tpu_custom_call.1} parent=1 // pred_fallthru
      _
    // Predicated region
    $region6: #{tpu_custom_call.1} parent=1 // pred_check
      _
    $region7: #{tpu_custom_call.1} parent=1 // pred_check_branch
      %20 = sbr.rel (0) target = $region9
    $region8: #{tpu_custom_call.1} parent=1 // pred_region
      %22 = dma.done [#allocation3], 64
    $region9: #{tpu_custom_call.1} parent=1 // pred_fallthru
      _
    %v23 = vld [vmem:[#allocation2] sm:$0xf]
    %v24 = vlaneseq
    %vm25 = vcmp.ge.s32.totalorder %v24, 0
    %vm26 = vcmp.lt.s32.totalorder %v24, 512
    %vm27 = vmand %vm25, %vm26
    %28 = vst.msk [vmem:[#allocation5] sm:$0xf] %vm27, %v23
    // Predicated region
    $region10: #{tpu_custom_call.1} parent=1 // pred_check
      _
    $region11: #{tpu_custom_call.1} parent=1 // pred_check_branch
      %30 = sbr.rel (0) target = $region13
    $region12: #{tpu_custom_call.1} parent=1 // pred_region
      %32 = vsyncadd [#allocation4], 0
      %s34 = sshll.u32 [#allocation5], 4
      %s35 = int_to_ptr.vmem [resolvable:$true] %s34
      %s36 = sshll.u32 %s1, 4
      %s37 = int_to_ptr.hbm [resolvable:$true] %s36
      %39 = dma.vmem_to_hbm [thread:$0]  %s35, 64, %s37, [#allocation4]
    $region13: #{tpu_custom_call.1} parent=1 // pred_fallthru
      _
    // Predicated region
    $region14: #{tpu_custom_call.1} parent=1 // pred_check
      _
    $region15: #{tpu_custom_call.1} parent=1 // pred_check_branch
      %41 = sbr.rel (0) target = $region17
    $region16: #{tpu_custom_call.1} parent=1 // pred_region
      %43 = dma.done [#allocation4], 64
    $region17: #{tpu_custom_call.1} parent=1 // pred_fallthru
      _
    %44 = vsyncpa [#allocation3], 1
    %45 = vsyncpa [#allocation4], 1

</llo_original>
